<compile_context>
chip_gen: v7x
topology: tpu7x:2x2x1
jax: 0.10.0
libtpu: 0.0.40
codegen_flags: <defaults>
</compile_context>

<pallas_src>
import jax
import jax.numpy as jnp
from jax.experimental import pallas as pl
from jax.experimental.pallas import tpu as pltpu

_LANE = 128      # TPU lane width
_SUBLANE = 8     # TPU sublane width


def _mlp_pair_kernel(x1_ref, x2_ref, w1_ref, shift_ref, w2_ref, b2_ref,
                     o1_ref, o2_ref):
    """Fused MLP applied to both row tiles (same VMEM-resident weights)."""
    w1 = w1_ref[...]        # (D, Hp)  bf16, resident
    shift = shift_ref[...]  # (1, Hp)  f32 fused BN scale/shift + b1
    w2 = w2_ref[...]        # (Hp, Op) bf16, resident
    b2 = b2_ref[...]        # (1, Op)  f32

    def apply(x_ref, o_ref):
        x = x_ref[...].astype(w1.dtype)                     # bf16 MXU path
        h = jnp.dot(x, w1, preferred_element_type=jnp.float32)
        h = jnp.maximum(h + shift, 0.0).astype(w2.dtype)    # shift + ReLU
        y = jnp.dot(h, w2, preferred_element_type=jnp.float32) + b2
        o_ref[...] = y.astype(o_ref.dtype)

    apply(x1_ref, o1_ref)
    apply(x2_ref, o2_ref)


def fold_params(w1, b1, w2, b2, bn=None, *, eps=1e-5, weight_dtype=jnp.bfloat16):
    """Host-side, one-time param prep.

    Folds BatchNorm1d (inference) and b1 exactly into (W1', shift'), zero-pads
    the hidden dim to a multiple of 128, conditionally lane-pads the output
    dim, and casts weights to bf16 (accumulation stays f32 in the kernel).
    """
    hidden_dim = w1.shape[1]
    output_dim = w2.shape[1]

    if bn is not None:
        gamma, beta, running_mean, running_var = bn
        inv_std = 1.0 / jnp.sqrt(running_var + eps)
        scale = gamma * inv_std                  # (1, H)
        shift = beta - running_mean * scale      # (1, H)
    else:
        scale = jnp.ones((1, hidden_dim), w1.dtype)
        shift = jnp.zeros((1, hidden_dim), w1.dtype)

    w1f = w1 * scale                             # column-wise BN fold (exact)
    shift1 = b1 * scale + shift                  # single fused per-feature shift

    # Zero-pad hidden dim to a lane multiple (mathematically inert: padded
    # columns produce h=0 -> ReLU(0)=0 -> zero W2 rows contribute nothing).
    hpad = (-hidden_dim) % _LANE
    if hpad:
        w1f = jnp.pad(w1f, ((0, 0), (0, hpad)))
        shift1 = jnp.pad(shift1, ((0, 0), (0, hpad)))
        w2 = jnp.pad(w2, ((0, hpad), (0, 0)))

    # Conditional lane-dense output padding: only pay the writeback inflation
    # when the output is wide enough for unmasked stores to win.
    if output_dim % _LANE != 0 and output_dim >= 64:
        opad = (-output_dim) % _LANE
        w2 = jnp.pad(w2, ((0, 0), (0, opad)))
        b2 = jnp.pad(b2, ((0, 0), (0, opad)))

    return (w1f.astype(weight_dtype), shift1.astype(jnp.float32),
            w2.astype(weight_dtype), b2.astype(jnp.float32), output_dim)


def _round8(v):
    return max(_SUBLANE, (v // _SUBLANE) * _SUBLANE)


def _select_tile_and_vmem(rows, input_dim, hidden_pad, out_pad, block_rows,
                          budget_bytes=40 * 1024 * 1024):
    """Pick the row tile under an explicit VMEM budget; return (tm, limit)."""
    # Resident, single-buffered bf16 weights + small f32 shift/bias rows.
    resident = 2 * (input_dim * hidden_pad + hidden_pad * out_pad)
    resident += 4 * _SUBLANE * (hidden_pad + out_pad)

    def step_bytes(tm):
        streamed = 2 * 2 * tm * (input_dim + out_pad) * 4     # x1/x2 + o1/o2, 2 bufs, f32
        interm = tm * (2 * input_dim + 6 * hidden_pad)        # bf16 x + f32/bf16 h
        return streamed + interm

    tm = _round8(min(block_rows, ((rows + _SUBLANE - 1) // _SUBLANE) * _SUBLANE))
    while tm > _SUBLANE and resident + step_bytes(tm) > budget_bytes:
        tm = _round8(tm // 2)
    vmem_limit = int(min(48 * 1024 * 1024,
                         max(resident + 1.5 * step_bytes(tm), 8 * 1024 * 1024)))
    return tm, vmem_limit


def _has_two_tensorcores():
    try:
        kind = jax.devices()[0].device_kind.lower()
    except Exception:
        return False
    return any(tag in kind for tag in ("v4", "v5p", "v7", "7x"))


def label_pretrainer_forward(x1, x2, fused_params, *, block_rows=512):
    """Mirrors LabelPretrainer.forward: same MLP applied to both inputs.

    Both inputs are processed by ONE pallas_call; weights are DMA'd once and
    stay VMEM-resident (constant index_map, single-buffered).
    """
    w1f, shift1, w2p, b2p, output_dim = fused_params
    n1, n2 = x1.shape[0], x2.shape[0]
    input_dim = x1.shape[1]
    hidden_pad = w1f.shape[1]
    out_pad = w2p.shape[1]
    rows = max(n1, n2)

    tm, vmem_limit = _select_tile_and_vmem(rows, input_dim, hidden_pad,
                                           out_pad, block_rows)
    grid_n = pl.cdiv(rows, tm)
    # Even grid length so both TensorCores get equal work on megacore parts.
    if grid_n > 1 and grid_n % 2 == 1 and _has_two_tensorcores():
        grid_n += 1
    padded = grid_n * tm

    def pad_rows(x):
        return x if x.shape[0] == padded else jnp.pad(
            x, ((0, padded - x.shape[0]), (0, 0)))

    x1p, x2p = pad_rows(x1), pad_rows(x2)
    out_dtype = x1.dtype

    def build(weight_pipeline_mode):
        wkw = ({} if weight_pipeline_mode is None
               else {"pipeline_mode": weight_pipeline_mode})
        in_specs = [
            pl.BlockSpec((tm, input_dim), lambda i: (i, 0)),               # x1 tile
            pl.BlockSpec((tm, input_dim), lambda i: (i, 0)),               # x2 tile
            pl.BlockSpec((input_dim, hidden_pad), lambda i: (0, 0), **wkw),  # W1' resident
            pl.BlockSpec((1, hidden_pad), lambda i: (0, 0), **wkw),          # fused shift
            pl.BlockSpec((hidden_pad, out_pad), lambda i: (0, 0), **wkw),    # W2 resident
            pl.BlockSpec((1, out_pad), lambda i: (0, 0), **wkw),             # b2
        ]
        out_specs = [
            pl.BlockSpec((tm, out_pad), lambda i: (i, 0)),
            pl.BlockSpec((tm, out_pad), lambda i: (i, 0)),
        ]
        return pl.pallas_call(
            _mlp_pair_kernel,
            out_shape=(jax.ShapeDtypeStruct((padded, out_pad), out_dtype),
                       jax.ShapeDtypeStruct((padded, out_pad), out_dtype)),
            grid=(grid_n,),
            in_specs=in_specs,
            out_specs=out_specs,
            compiler_params=pltpu.CompilerParams(
                dimension_semantics=("parallel",),
                vmem_limit_bytes=vmem_limit),
        )

    try:
        o1, o2 = build(pl.Buffered(1))(x1p, x2p, w1f, shift1, w2p, b2p)
    except Exception:
        # Fallback: default double-buffering if Buffered(1) is rejected.
        o1, o2 = build(None)(x1p, x2p, w1f, shift1, w2p, b2p)

    # Slice only when padding was actually applied (no-op extra HBM pass
    # otherwise).
    if padded != n1 or out_pad != output_dim:
        o1 = o1[:n1, :output_dim]
    if padded != n2 or out_pad != output_dim:
        o2 = o2[:n2, :output_dim]
    return o1, o2


def init_params(key, input_dim, hidden_dim, output_dim, use_batch_norm=True):
    """Deterministic synthetic parameters (shapes match the nn.Module)."""
    ks = jax.random.split(key, 8)
    w1 = jax.random.normal(ks[0], (input_dim, hidden_dim), jnp.float32) * 0.05
    b1 = jax.random.normal(ks[1], (1, hidden_dim), jnp.float32) * 0.01
    w2 = jax.random.normal(ks[2], (hidden_dim, output_dim), jnp.float32) * 0.05
    b2 = jax.random.normal(ks[3], (1, output_dim), jnp.float32) * 0.01
    if use_batch_norm:
        gamma = 1.0 + 0.1 * jax.random.normal(ks[4], (1, hidden_dim), jnp.float32)
        beta = 0.1 * jax.random.normal(ks[5], (1, hidden_dim), jnp.float32)
        running_mean = 0.05 * jax.random.normal(ks[6], (1, hidden_dim), jnp.float32)
        running_var = jnp.abs(
            1.0 + 0.1 * jax.random.normal(ks[7], (1, hidden_dim), jnp.float32))
        bn = (gamma, beta, running_mean, running_var)
    else:
        bn = None
    return w1, b1, w2, b2, bn


def reference_forward(x1, x2, raw_params, *, eps=1e-5):
    """Pure-JAX f32 reference of the same eval-mode forward."""
    w1, b1, w2, b2, bn = raw_params

    def f(x):
        h = x @ w1 + b1
        if bn is not None:
            gamma, beta, running_mean, running_var = bn
            h = (h - running_mean) / jnp.sqrt(running_var + eps) * gamma + beta
        h = jnp.maximum(h, 0.0)      # ReLU; Dropout is identity in eval mode
        return h @ w2 + b2

    return f(x1), f(x2)


if __name__ == "__main__":
    # Small shapes consistent with the module: batch=8, input_dim=32,
    # hidden_dim=64, output_dim=16.
    batch, input_dim, hidden_dim, output_dim = 8, 32, 64, 16

    key = jax.random.PRNGKey(0)
    kx1, kx2, kp = jax.random.split(key, 3)
    x1 = jax.random.normal(kx1, (batch, input_dim), jnp.float32)
    x2 = jax.random.normal(kx2, (batch, input_dim), jnp.float32)

    raw_params = init_params(kp, input_dim, hidden_dim, output_dim,
                             use_batch_norm=True)
    fused_params = fold_params(raw_params[0], raw_params[1],
                               raw_params[2], raw_params[3], raw_params[4])

    pred_x1, pred_x2 = label_pretrainer_forward(x1, x2, fused_params)
    jax.block_until_ready((pred_x1, pred_x2))

    ref1, ref2 = reference_forward(x1, x2, raw_params)
    assert pred_x1.shape == (batch, output_dim)
    assert pred_x2.shape == (batch, output_dim)
    # bf16 weight/activation path vs f32 reference: loosen tolerance accordingly.
    assert jnp.allclose(pred_x1, ref1, atol=2e-2, rtol=2e-2)
    assert jnp.allclose(pred_x2, ref2, atol=2e-2, rtol=2e-2)

    print("KERNEL_OK")
</pallas_src>

<mosaic_0001>
module attributes {stable_mosaic.version = 11 : i64} {
  func.func @_mlp_pair_kernel(%arg0: i32, %arg1: memref<8x32xf32, #tpu.memory_space<vmem>>, %arg2: memref<8x32xf32, #tpu.memory_space<vmem>>, %arg3: memref<32x128xbf16, #tpu.memory_space<vmem>>, %arg4: memref<1x128xf32, #tpu.memory_space<vmem>>, %arg5: memref<128x16xbf16, #tpu.memory_space<vmem>>, %arg6: memref<1x16xf32, #tpu.memory_space<vmem>>, %arg7: memref<8x16xf32, #tpu.memory_space<vmem>>, %arg8: memref<8x16xf32, #tpu.memory_space<vmem>>) attributes {dimension_semantics = [#tpu.dimension_semantics<parallel>], iteration_bounds = array<i64: 1>, scalar_prefetch = 0 : i64, scratch_operands = 0 : i64, tpu.core_type = #tpu.core_type<tc>, window_params = [{transform_indices = @transform_0, window_bounds = array<i64: 8, 32>}, {transform_indices = @transform_1, window_bounds = array<i64: 8, 32>}, {pipeline_mode = #tpu.pipeline_mode<synchronous>, transform_indices = @transform_2, window_bounds = array<i64: 32, 128>}, {pipeline_mode = #tpu.pipeline_mode<synchronous>, transform_indices = @transform_3, window_bounds = array<i64: 1, 128>}, {pipeline_mode = #tpu.pipeline_mode<synchronous>, transform_indices = @transform_4, window_bounds = array<i64: 128, 16>}, {pipeline_mode = #tpu.pipeline_mode<synchronous>, transform_indices = @transform_5, window_bounds = array<i64: 1, 16>}, {transform_indices = @transform_6, window_bounds = array<i64: 8, 16>}, {transform_indices = @transform_7, window_bounds = array<i64: 8, 16>}]} {
    %c0 = arith.constant 0 : index
    %c0_0 = arith.constant 0 : index
    %0 = vector.load %arg3[%c0, %c0_0] : memref<32x128xbf16, #tpu.memory_space<vmem>>, vector<32x128xbf16>
    %c0_1 = arith.constant 0 : index
    %c0_2 = arith.constant 0 : index
    %1 = vector.load %arg4[%c0_1, %c0_2] : memref<1x128xf32, #tpu.memory_space<vmem>>, vector<1x128xf32>
    %c0_3 = arith.constant 0 : index
    %c0_4 = arith.constant 0 : index
    %2 = vector.load %arg5[%c0_3, %c0_4] : memref<128x16xbf16, #tpu.memory_space<vmem>>, vector<128x16xbf16>
    %c0_5 = arith.constant 0 : index
    %c0_6 = arith.constant 0 : index
    %3 = vector.load %arg6[%c0_5, %c0_6] : memref<1x16xf32, #tpu.memory_space<vmem>>, vector<1x16xf32>
    %c0_7 = arith.constant 0 : index
    %c0_8 = arith.constant 0 : index
    %4 = vector.load %arg1[%c0_7, %c0_8] : memref<8x32xf32, #tpu.memory_space<vmem>>, vector<8x32xf32>
    %5 = arith.truncf %4 : vector<8x32xf32> to vector<8x32xbf16>
    %cst = arith.constant dense<0.000000e+00> : vector<8x128xf32>
    %6 = tpu.matmul %5, %0, %cst {dimension_numbers = #tpu.dot_dimension_numbers<[1], [0], [0], [1], [0, 0, 1, 1], [], []>} : vector<8x32xbf16>, vector<32x128xbf16>, vector<8x128xf32> -> vector<8x128xf32>
    %7 = vector.broadcast %1 : vector<1x128xf32> to vector<8x128xf32>
    %8 = arith.addf %6, %7 : vector<8x128xf32>
    %cst_9 = arith.constant 0.000000e+00 : f32
    %9 = vector.broadcast %cst_9 : f32 to vector<8x128xf32>
    %10 = arith.maximumf %8, %9 : vector<8x128xf32>
    %11 = arith.truncf %10 : vector<8x128xf32> to vector<8x128xbf16>
    %cst_10 = arith.constant dense<0.000000e+00> : vector<8x16xf32>
    %12 = tpu.matmul %11, %2, %cst_10 {dimension_numbers = #tpu.dot_dimension_numbers<[1], [0], [0], [1], [0, 0, 1, 1], [], []>} : vector<8x128xbf16>, vector<128x16xbf16>, vector<8x16xf32> -> vector<8x16xf32>
    %13 = vector.broadcast %3 : vector<1x16xf32> to vector<8x16xf32>
    %14 = arith.addf %12, %13 : vector<8x16xf32>
    %c0_11 = arith.constant 0 : index
    %c0_12 = arith.constant 0 : index
    %15 = vector.load %arg7[%c0_11, %c0_12] : memref<8x16xf32, #tpu.memory_space<vmem>>, vector<8x16xf32>
    tpu.vector_store %arg7[%c0_11, %c0_12], %14 {strides = array<i32>} : memref<8x16xf32, #tpu.memory_space<vmem>>, vector<8x16xf32>,
    %c0_13 = arith.constant 0 : index
    %c0_14 = arith.constant 0 : index
    %16 = vector.load %arg2[%c0_13, %c0_14] : memref<8x32xf32, #tpu.memory_space<vmem>>, vector<8x32xf32>
    %17 = arith.truncf %16 : vector<8x32xf32> to vector<8x32xbf16>
    %cst_15 = arith.constant dense<0.000000e+00> : vector<8x128xf32>
    %18 = tpu.matmul %17, %0, %cst_15 {dimension_numbers = #tpu.dot_dimension_numbers<[1], [0], [0], [1], [0, 0, 1, 1], [], []>} : vector<8x32xbf16>, vector<32x128xbf16>, vector<8x128xf32> -> vector<8x128xf32>
    %19 = vector.broadcast %1 : vector<1x128xf32> to vector<8x128xf32>
    %20 = arith.addf %18, %19 : vector<8x128xf32>
    %cst_16 = arith.constant 0.000000e+00 : f32
    %21 = vector.broadcast %cst_16 : f32 to vector<8x128xf32>
    %22 = arith.maximumf %20, %21 : vector<8x128xf32>
    %23 = arith.truncf %22 : vector<8x128xf32> to vector<8x128xbf16>
    %cst_17 = arith.constant dense<0.000000e+00> : vector<8x16xf32>
    %24 = tpu.matmul %23, %2, %cst_17 {dimension_numbers = #tpu.dot_dimension_numbers<[1], [0], [0], [1], [0, 0, 1, 1], [], []>} : vector<8x128xbf16>, vector<128x16xbf16>, vector<8x16xf32> -> vector<8x16xf32>
    %25 = vector.broadcast %3 : vector<1x16xf32> to vector<8x16xf32>
    %26 = arith.addf %24, %25 : vector<8x16xf32>
    %c0_18 = arith.constant 0 : index
    %c0_19 = arith.constant 0 : index
    %27 = vector.load %arg8[%c0_18, %c0_19] : memref<8x16xf32, #tpu.memory_space<vmem>>, vector<8x16xf32>
    tpu.vector_store %arg8[%c0_18, %c0_19], %26 {strides = array<i32>} : memref<8x16xf32, #tpu.memory_space<vmem>>, vector<8x16xf32>,
    return
  }
  func.func @transform_0(%arg0: i32) -> (i32, i32) {
    %c0_i32 = arith.constant 0 : i32
    %c0_i32_0 = arith.constant 0 : i32
    return %arg0, %c0_i32 : i32, i32
  }
  func.func @transform_1(%arg0: i32) -> (i32, i32) {
    %c0_i32 = arith.constant 0 : i32
    %c0_i32_0 = arith.constant 0 : i32
    return %arg0, %c0_i32 : i32, i32
  }
  func.func @transform_2(%arg0: i32) -> (i32, i32) {
    %c0_i32 = arith.constant 0 : i32
    %c0_i32_0 = arith.constant 0 : i32
    %c0_i32_1 = arith.constant 0 : i32
    return %c0_i32, %c0_i32_0 : i32, i32
  }
  func.func @transform_3(%arg0: i32) -> (i32, i32) {
    %c0_i32 = arith.constant 0 : i32
    %c0_i32_0 = arith.constant 0 : i32
    %c0_i32_1 = arith.constant 0 : i32
    return %c0_i32, %c0_i32_0 : i32, i32
  }
  func.func @transform_4(%arg0: i32) -> (i32, i32) {
    %c0_i32 = arith.constant 0 : i32
    %c0_i32_0 = arith.constant 0 : i32
    %c0_i32_1 = arith.constant 0 : i32
    return %c0_i32, %c0_i32_0 : i32, i32
  }
  func.func @transform_5(%arg0: i32) -> (i32, i32) {
    %c0_i32 = arith.constant 0 : i32
    %c0_i32_0 = arith.constant 0 : i32
    %c0_i32_1 = arith.constant 0 : i32
    return %c0_i32, %c0_i32_0 : i32, i32
  }
  func.func @transform_6(%arg0: i32) -> (i32, i32) {
    %c0_i32 = arith.constant 0 : i32
    %c0_i32_0 = arith.constant 0 : i32
    return %arg0, %c0_i32 : i32, i32
  }
  func.func @transform_7(%arg0: i32) -> (i32, i32) {
    %c0_i32 = arith.constant 0 : i32
    %c0_i32_0 = arith.constant 0 : i32
    return %arg0, %c0_i32 : i32, i32
  }
}

module attributes {stable_mosaic.version = 11 : i64} {
  func.func @_mlp_pair_kernel(%arg0: i32, %arg1: memref<8x32xf32, #tpu.memory_space<vmem>>, %arg2: memref<8x32xf32, #tpu.memory_space<vmem>>, %arg3: memref<32x128xbf16, #tpu.memory_space<vmem>>, %arg4: memref<1x128xf32, #tpu.memory_space<vmem>>, %arg5: memref<128x16xbf16, #tpu.memory_space<vmem>>, %arg6: memref<1x16xf32, #tpu.memory_space<vmem>>, %arg7: memref<8x16xf32, #tpu.memory_space<vmem>>, %arg8: memref<8x16xf32, #tpu.memory_space<vmem>>) attributes {dimension_semantics = [#tpu.dimension_semantics<parallel>], iteration_bounds = array<i64: 1>, scalar_prefetch = 0 : i64, scratch_operands = 0 : i64, tpu.core_type = #tpu.core_type<tc>, window_params = [{transform_indices = @transform_0, window_bounds = array<i64: 8, 32>}, {transform_indices = @transform_1, window_bounds = array<i64: 8, 32>}, {pipeline_mode = #tpu.pipeline_mode<synchronous>, transform_indices = @transform_2, window_bounds = array<i64: 32, 128>}, {pipeline_mode = #tpu.pipeline_mode<synchronous>, transform_indices = @transform_3, window_bounds = array<i64: 1, 128>}, {pipeline_mode = #tpu.pipeline_mode<synchronous>, transform_indices = @transform_4, window_bounds = array<i64: 128, 16>}, {pipeline_mode = #tpu.pipeline_mode<synchronous>, transform_indices = @transform_5, window_bounds = array<i64: 1, 16>}, {transform_indices = @transform_6, window_bounds = array<i64: 8, 16>}, {transform_indices = @transform_7, window_bounds = array<i64: 8, 16>}]} {
    %c0 = arith.constant 0 : index
    %c0_0 = arith.constant 0 : index
    %0 = vector.load %arg3[%c0, %c0_0] : memref<32x128xbf16, #tpu.memory_space<vmem>>, vector<32x128xbf16>
    %c0_1 = arith.constant 0 : index
    %c0_2 = arith.constant 0 : index
    %1 = vector.load %arg4[%c0_1, %c0_2] : memref<1x128xf32, #tpu.memory_space<vmem>>, vector<1x128xf32>
    %c0_3 = arith.constant 0 : index
    %c0_4 = arith.constant 0 : index
    %2 = vector.load %arg5[%c0_3, %c0_4] : memref<128x16xbf16, #tpu.memory_space<vmem>>, vector<128x16xbf16>
    %c0_5 = arith.constant 0 : index
    %c0_6 = arith.constant 0 : index
    %3 = vector.load %arg6[%c0_5, %c0_6] : memref<1x16xf32, #tpu.memory_space<vmem>>, vector<1x16xf32>
    %c0_7 = arith.constant 0 : index
    %c0_8 = arith.constant 0 : index
    %4 = vector.load %arg1[%c0_7, %c0_8] : memref<8x32xf32, #tpu.memory_space<vmem>>, vector<8x32xf32>
    %5 = arith.truncf %4 : vector<8x32xf32> to vector<8x32xbf16>
    %cst = arith.constant dense<0.000000e+00> : vector<8x128xf32>
    %6 = tpu.matmul %5, %0, %cst {dimension_numbers = #tpu.dot_dimension_numbers<[1], [0], [0], [1], [0, 0, 1, 1], [], []>} : vector<8x32xbf16>, vector<32x128xbf16>, vector<8x128xf32> -> vector<8x128xf32>
    %7 = vector.broadcast %1 : vector<1x128xf32> to vector<8x128xf32>
    %8 = arith.addf %6, %7 : vector<8x128xf32>
    %cst_9 = arith.constant 0.000000e+00 : f32
    %9 = vector.broadcast %cst_9 : f32 to vector<8x128xf32>
    %10 = arith.maximumf %8, %9 : vector<8x128xf32>
    %11 = arith.truncf %10 : vector<8x128xf32> to vector<8x128xbf16>
    %cst_10 = arith.constant dense<0.000000e+00> : vector<8x16xf32>
    %12 = tpu.matmul %11, %2, %cst_10 {dimension_numbers = #tpu.dot_dimension_numbers<[1], [0], [0], [1], [0, 0, 1, 1], [], []>} : vector<8x128xbf16>, vector<128x16xbf16>, vector<8x16xf32> -> vector<8x16xf32>
    %13 = vector.broadcast %3 : vector<1x16xf32> to vector<8x16xf32>
    %14 = arith.addf %12, %13 : vector<8x16xf32>
    %c0_11 = arith.constant 0 : index
    %c0_12 = arith.constant 0 : index
    %15 = vector.load %arg7[%c0_11, %c0_12] : memref<8x16xf32, #tpu.memory_space<vmem>>, vector<8x16xf32>
    tpu.vector_store %arg7[%c0_11, %c0_12], %14 {strides = array<i32>} : memref<8x16xf32, #tpu.memory_space<vmem>>, vector<8x16xf32>,
    %c0_13 = arith.constant 0 : index
    %c0_14 = arith.constant 0 : index
    %16 = vector.load %arg2[%c0_13, %c0_14] : memref<8x32xf32, #tpu.memory_space<vmem>>, vector<8x32xf32>
    %17 = arith.truncf %16 : vector<8x32xf32> to vector<8x32xbf16>
    %cst_15 = arith.constant dense<0.000000e+00> : vector<8x128xf32>
    %18 = tpu.matmul %17, %0, %cst_15 {dimension_numbers = #tpu.dot_dimension_numbers<[1], [0], [0], [1], [0, 0, 1, 1], [], []>} : vector<8x32xbf16>, vector<32x128xbf16>, vector<8x128xf32> -> vector<8x128xf32>
    %19 = vector.broadcast %1 : vector<1x128xf32> to vector<8x128xf32>
    %20 = arith.addf %18, %19 : vector<8x128xf32>
    %cst_16 = arith.constant 0.000000e+00 : f32
    %21 = vector.broadcast %cst_16 : f32 to vector<8x128xf32>
    %22 = arith.maximumf %20, %21 : vector<8x128xf32>
    %23 = arith.truncf %22 : vector<8x128xf32> to vector<8x128xbf16>
    %cst_17 = arith.constant dense<0.000000e+00> : vector<8x16xf32>
    %24 = tpu.matmul %23, %2, %cst_17 {dimension_numbers = #tpu.dot_dimension_numbers<[1], [0], [0], [1], [0, 0, 1, 1], [], []>} : vector<8x128xbf16>, vector<128x16xbf16>, vector<8x16xf32> -> vector<8x16xf32>
    %25 = vector.broadcast %3 : vector<1x16xf32> to vector<8x16xf32>
    %26 = arith.addf %24, %25 : vector<8x16xf32>
    %c0_18 = arith.constant 0 : index
    %c0_19 = arith.constant 0 : index
    %27 = vector.load %arg8[%c0_18, %c0_19] : memref<8x16xf32, #tpu.memory_space<vmem>>, vector<8x16xf32>
    tpu.vector_store %arg8[%c0_18, %c0_19], %26 {strides = array<i32>} : memref<8x16xf32, #tpu.memory_space<vmem>>, vector<8x16xf32>,
    return
  }
  func.func @transform_0(%arg0: i32) -> (i32, i32) {
    %c0_i32 = arith.constant 0 : i32
    %c0_i32_0 = arith.constant 0 : i32
    return %arg0, %c0_i32 : i32, i32
  }
  func.func @transform_1(%arg0: i32) -> (i32, i32) {
    %c0_i32 = arith.constant 0 : i32
    %c0_i32_0 = arith.constant 0 : i32
    return %arg0, %c0_i32 : i32, i32
  }
  func.func @transform_2(%arg0: i32) -> (i32, i32) {
    %c0_i32 = arith.constant 0 : i32
    %c0_i32_0 = arith.constant 0 : i32
    %c0_i32_1 = arith.constant 0 : i32
    return %c0_i32, %c0_i32_0 : i32, i32
  }
  func.func @transform_3(%arg0: i32) -> (i32, i32) {
    %c0_i32 = arith.constant 0 : i32
    %c0_i32_0 = arith.constant 0 : i32
    %c0_i32_1 = arith.constant 0 : i32
    return %c0_i32, %c0_i32_0 : i32, i32
  }
  func.func @transform_4(%arg0: i32) -> (i32, i32) {
    %c0_i32 = arith.constant 0 : i32
    %c0_i32_0 = arith.constant 0 : i32
    %c0_i32_1 = arith.constant 0 : i32
    return %c0_i32, %c0_i32_0 : i32, i32
  }
  func.func @transform_5(%arg0: i32) -> (i32, i32) {
    %c0_i32 = arith.constant 0 : i32
    %c0_i32_0 = arith.constant 0 : i32
    %c0_i32_1 = arith.constant 0 : i32
    return %c0_i32, %c0_i32_0 : i32, i32
  }
  func.func @transform_6(%arg0: i32) -> (i32, i32) {
    %c0_i32 = arith.constant 0 : i32
    %c0_i32_0 = arith.constant 0 : i32
    return %arg0, %c0_i32 : i32, i32
  }
  func.func @transform_7(%arg0: i32) -> (i32, i32) {
    %c0_i32 = arith.constant 0 : i32
    %c0_i32_0 = arith.constant 0 : i32
    return %arg0, %c0_i32 : i32, i32
  }
}

</mosaic_0001>

<llo_original>
// kernel: tpu_custom_call.1
$region0: #{tpu_custom_call.1}
  #allocation0 [shape = 'u32[]', space=smem, size = 0x4, offset = 0x4, fixed_abs, tag = 'smem constant byte address 0x4 - core index']
  #allocation1 [shape = 'u32[144,128]{1,0:T(1,128)}', space=vmem, size = 0x12000, scoped, tag = 'internal scratch']
  %s0 = inlined_call_operand.vmem [shape: f32[8,32], index: 0, kind: input, shape index: {}]
  %s1 = inlined_call_operand.vmem [shape: f32[8,32], index: 1, kind: input, shape index: {}]
  %s2 = inlined_call_operand.vmem [shape: bf16[32,128], index: 2, kind: input, shape index: {}]
  %s3 = inlined_call_operand.vmem [shape: f32[1,128], index: 3, kind: input, shape index: {}]
  %s4 = inlined_call_operand.vmem [shape: bf16[128,16], index: 4, kind: input, shape index: {}]
  %s5 = inlined_call_operand.vmem [shape: f32[1,16], index: 5, kind: input, shape index: {}]
  %s6 = inlined_call_operand.hbm [shape: f32[8,16], index: 6, kind: output, shape index: {0}]
  %s7 = inlined_call_operand.hbm [shape: f32[8,16], index: 7, kind: output, shape index: {1}]
  %8 = xla_tuple %s6, %s7
  %s9 = sld [smem:[#allocation0]]
  $region42: #{tpu_custom_call.1} parent=0
    _
  %s11 = ssub.s32 1, %s9
  %s12 = scalar_select 0, %s11, %s9
  $region1: #{tpu_custom_call.1} parent=0
    #allocation2 [shape = 'u8[4096]{0}', space=vmem, size = 0x1000, scoped, tag = 'output window, operand 0, single buffered']
    #allocation3 [shape = 's32[1]{0}', space=sflag, size = 0x4, scoped, tag = 'scoped memory for tpu_custom_call.1']
    #allocation4 [shape = 'u8[4096]{0}', space=vmem, size = 0x1000, scoped, tag = 'output window, operand 1, single buffered']
    #allocation5 [shape = 's32[1]{0}', space=sflag, size = 0x4, scoped, tag = 'scoped memory for tpu_custom_call.1']
    %13 = vsyncpa [#allocation3], 0
    %14 = vsyncpa [#allocation5], 0
    // Predicated region
    $region2: #{tpu_custom_call.1} parent=1 // pred_check
      _
    $region3: #{tpu_custom_call.1} parent=1 // pred_check_branch
      %16 = sbr.rel (0) target = $region5
    $region4: #{tpu_custom_call.1} parent=1 // pred_region
      _
    $region5: #{tpu_custom_call.1} parent=1 // pred_fallthru
      _
    // Predicated region
    $region6: #{tpu_custom_call.1} parent=1 // pred_check
      _
    $region7: #{tpu_custom_call.1} parent=1 // pred_check_branch
      %18 = sbr.rel (0) target = $region9
    $region8: #{tpu_custom_call.1} parent=1 // pred_region
      _
    $region9: #{tpu_custom_call.1} parent=1 // pred_fallthru
      _
    // Predicated region
    $region10: #{tpu_custom_call.1} parent=1 // pred_check
      _
    $region11: #{tpu_custom_call.1} parent=1 // pred_check_branch
      %20 = sbr.rel (0) target = $region13
    $region12: #{tpu_custom_call.1} parent=1 // pred_region
      _
    $region13: #{tpu_custom_call.1} parent=1 // pred_fallthru
      _
    // Predicated region
    $region14: #{tpu_custom_call.1} parent=1 // pred_check
      _
    $region15: #{tpu_custom_call.1} parent=1 // pred_check_branch
      %22 = sbr.rel (0) target = $region17
    $region16: #{tpu_custom_call.1} parent=1 // pred_region
      _
    $region17: #{tpu_custom_call.1} parent=1 // pred_fallthru
      _
    // Predicated region
    $region18: #{tpu_custom_call.1} parent=1 // pred_check
      _
    $region19: #{tpu_custom_call.1} parent=1 // pred_check_branch
      %24 = sbr.rel (0) target = $region21
    $region20: #{tpu_custom_call.1} parent=1 // pred_region
      _
    $region21: #{tpu_custom_call.1} parent=1 // pred_fallthru
      _
    // Predicated region
    $region22: #{tpu_custom_call.1} parent=1 // pred_check
      _
    $region23: #{tpu_custom_call.1} parent=1 // pred_check_branch
      %26 = sbr.rel (0) target = $region25
    $region24: #{tpu_custom_call.1} parent=1 // pred_region
      _
    $region25: #{tpu_custom_call.1} parent=1 // pred_fallthru
      _
    %v28 = vld [vmem:[%s2] sm:$0xf]
    %v29 = vld [vmem:[%s2 + $0x4] sm:$0xf]
    %v30 = vld [vmem:[%s2 + $0x8] sm:$0xf]
    %v31 = vld [vmem:[%s2 + $0xc] sm:$0xf]
    %v32 = vld [vmem:[%s3] sm:$0x1]
    %v33 = vld [vmem:[%s4] sm:$0xf]
    %v34 = vld [vmem:[%s4 + $0x4] sm:$0xf]
    %v35 = vld [vmem:[%s4 + $0x8] sm:$0xf]
    %v36 = vld [vmem:[%s4 + $0xc] sm:$0xf]
    %v37 = vld [vmem:[%s4 + $0x10] sm:$0xf]
    %v38 = vld [vmem:[%s4 + $0x14] sm:$0xf]
    %v39 = vld [vmem:[%s4 + $0x18] sm:$0xf]
    %v40 = vld [vmem:[%s4 + $0x1c] sm:$0xf]
    %v41 = vld [vmem:[%s4 + $0x20] sm:$0xf]
    %v42 = vld [vmem:[%s4 + $0x24] sm:$0xf]
    %v43 = vld [vmem:[%s4 + $0x28] sm:$0xf]
    %v44 = vld [vmem:[%s4 + $0x2c] sm:$0xf]
    %v45 = vld [vmem:[%s4 + $0x30] sm:$0xf]
    %v46 = vld [vmem:[%s4 + $0x34] sm:$0xf]
    %v47 = vld [vmem:[%s4 + $0x38] sm:$0xf]
    %v48 = vld [vmem:[%s4 + $0x3c] sm:$0xf]
    %v49 = vld [vmem:[%s5] sm:$0x1]
    %v50 = vld [vmem:[%s0] sm:$0xff]
    %v51 = vpack.c.bf16 %v50, %v50
    %v53 = vlaneseq
    %v54 = vshrl.u32 %v53, 7
    %v55 = vsub.s32 0, %v54
    %v56 = vrot.slane %v32, %v55
    %v62 = vunpack.c.l.b16 %v28
    %v63 = vunpack.c.l.b16 %v29
    %v64 = vunpack.c.l.b16 %v30
    %v65 = vunpack.c.l.b16 %v31
    %v66 = vpack.c.b16 %v63, %v62
    %v67 = vpack.c.b16 %v65, %v64
    %vm70 = vcmask 261120
    %v72 = vsel %vm70, %v51, 0
    %74 = vmatprep.subr.bf16.mxu0 0
    %75 = vmatpush1.bf16.msra.mxu0 %v66
    %76 = vmatprep.subr.bf16.mxu0 0
    %77 = vmatpush1.bf16.msra.mxu0 %v67
    %78 = vmatprep.subr.bf16.mxu0 0
    %79 = vmatpush1.bf16.msra.mxu0 0
    %80 = vmatprep.subr.bf16.mxu0 0
    %81 = vmatpush1.bf16.msra.mxu0 0
    %82 = vmatprep.subr.bf16.mxu0 0
    %83 = vmatpush1.bf16.msra.mxu0 0
    %84 = vmatprep.subr.bf16.mxu0 0
    %85 = vmatpush1.bf16.msra.mxu0 0
    %86 = vmatprep.subr.bf16.mxu0 0
    %87 = vmatpush1.bf16.msra.mxu0 0
    %88 = vmatprep.subr.bf16.mxu0 0
    %89 = vmatpush1.bf16.msra.mxu0 0
    %90 = vmatprep.subr.bf16.mxu0 0
    %91 = vmatpush1.bf16.msra.mxu0 0
    %92 = vmatprep.subr.bf16.mxu0 0
    %93 = vmatpush1.bf16.msra.mxu0 0
    %94 = vmatprep.subr.bf16.mxu0 0
    %95 = vmatpush1.bf16.msra.mxu0 0
    %96 = vmatprep.subr.bf16.mxu0 0
    %97 = vmatpush1.bf16.msra.mxu0 0
    %98 = vmatprep.subr.bf16.mxu0 0
    %99 = vmatpush1.bf16.msra.mxu0 0
    %100 = vmatprep.subr.bf16.mxu0 0
    %101 = vmatpush1.bf16.msra.mxu0 0
    %102 = vmatprep.subr.bf16.mxu0 0
    %103 = vmatpush1.bf16.msra.mxu0 0
    %104 = vmatprep.subr.bf16.mxu0 0
    %105 = vmatpush1.bf16.msra.mxu0 0
    %106 = vmatprep.mubr.bf16.mxu0 0
    %107 = vmatmul.mubr.bf16.gmra.mrb[0].mxu0 %v72
    %v108 = vpop.f32.mrb[0].mxu0
    %v109 = vadd.f32 %v56, %v108
    %v110 = vpop.f32.mrb[0].mxu0
    %v111 = vpop.f32.mrb[0].mxu0
    %v112 = vpop.f32.mrb[0].mxu0
    %113 = vdwg.mxu0
    %v114 = vmax.f32 %v109, 0.0
    %v115 = vpack.c.bf16 %v114, %v114
    %v117 = vlaneseq
    %v118 = vshrl.u32 %v117, 7
    %v119 = vsub.s32 0, %v118
    %v120 = vrot.slane %v49, %v119
    %v138 = vunpack.c.l.b16 %v33
    %v139 = vunpack.c.l.b16 %v34
    %v140 = vunpack.c.l.b16 %v35
    %v141 = vunpack.c.l.b16 %v36
    %v142 = vunpack.c.l.b16 %v37
    %v143 = vunpack.c.l.b16 %v38
    %v144 = vunpack.c.l.b16 %v39
    %v145 = vunpack.c.l.b16 %v40
    %v146 = vunpack.c.l.b16 %v41
    %v147 = vunpack.c.l.b16 %v42
    %v148 = vunpack.c.l.b16 %v43
    %v149 = vunpack.c.l.b16 %v44
    %v150 = vunpack.c.l.b16 %v45
    %v151 = vunpack.c.l.b16 %v46
    %v152 = vunpack.c.l.b16 %v47
    %v153 = vunpack.c.l.b16 %v48
    %v154 = vpack.c.b16 %v139, %v138
    %v155 = vpack.c.b16 %v141, %v140
    %v156 = vpack.c.b16 %v143, %v142
    %v157 = vpack.c.b16 %v145, %v144
    %v158 = vpack.c.b16 %v147, %v146
    %v159 = vpack.c.b16 %v149, %v148
    %v160 = vpack.c.b16 %v151, %v150
    %v161 = vpack.c.b16 %v153, %v152
    %170 = vmatprep.subr.bf16.mxu0 0
    %171 = vmatpush1.bf16.msra.mxu0 %v154
    %172 = vmatprep.subr.bf16.mxu0 0
    %173 = vmatpush1.bf16.msra.mxu0 %v155
    %174 = vmatprep.subr.bf16.mxu0 0
    %175 = vmatpush1.bf16.msra.mxu0 %v156
    %176 = vmatprep.subr.bf16.mxu0 0
    %177 = vmatpush1.bf16.msra.mxu0 %v157
    %178 = vmatprep.subr.bf16.mxu0 0
    %179 = vmatpush1.bf16.msra.mxu0 %v158
    %180 = vmatprep.subr.bf16.mxu0 0
    %181 = vmatpush1.bf16.msra.mxu0 %v159
    %182 = vmatprep.subr.bf16.mxu0 0
    %183 = vmatpush1.bf16.msra.mxu0 %v160
    %184 = vmatprep.subr.bf16.mxu0 0
    %185 = vmatpush1.bf16.msra.mxu0 %v161
    %186 = vmatprep.subr.bf16.mxu0 0
    %187 = vmatpush1.bf16.msra.mxu0 0
    %188 = vmatprep.subr.bf16.mxu0 0
    %189 = vmatpush1.bf16.msra.mxu0 0
    %190 = vmatprep.subr.bf16.mxu0 0
    %191 = vmatpush1.bf16.msra.mxu0 0
    %192 = vmatprep.subr.bf16.mxu0 0
    %193 = vmatpush1.bf16.msra.mxu0 0
    %194 = vmatprep.subr.bf16.mxu0 0
    %195 = vmatpush1.bf16.msra.mxu0 0
    %196 = vmatprep.subr.bf16.mxu0 0
    %197 = vmatpush1.bf16.msra.mxu0 0
    %198 = vmatprep.subr.bf16.mxu0 0
    %199 = vmatpush1.bf16.msra.mxu0 0
    %200 = vmatprep.subr.bf16.mxu0 0
    %201 = vmatpush1.bf16.msra.mxu0 0
    %202 = vmatprep.mubr.bf16.mxu0 0
    %203 = vmatmul.mubr.bf16.gmra.mrb[0].mxu0 %v115
    %v204 = vpop.f32.mrb[0].mxu0
    %v205 = vadd.f32 %v120, %v204
    %v206 = vpop.f32.mrb[0].mxu0
    %v207 = vpop.f32.mrb[0].mxu0
    %v208 = vpop.f32.mrb[0].mxu0
    %209 = vdwg.mxu0
    %vm210 = vcmask 130048
    %211 = vst.msk [vmem:[#allocation2] sm:$0xff] %vm210, %v205
    %v212 = vld [vmem:[%s1] sm:$0xff]
    %v213 = vpack.c.bf16 %v212, %v212
    %v215 = vsel %vm70, %v213, 0
    %217 = vmatprep.subr.bf16.mxu0 0
    %218 = vmatpush1.bf16.msra.mxu0 %v66
    %219 = vmatprep.subr.bf16.mxu0 0
    %220 = vmatpush1.bf16.msra.mxu0 %v67
    %221 = vmatprep.subr.bf16.mxu0 0
    %222 = vmatpush1.bf16.msra.mxu0 0
    %223 = vmatprep.subr.bf16.mxu0 0
    %224 = vmatpush1.bf16.msra.mxu0 0
    %225 = vmatprep.subr.bf16.mxu0 0
    %226 = vmatpush1.bf16.msra.mxu0 0
    %227 = vmatprep.subr.bf16.mxu0 0
    %228 = vmatpush1.bf16.msra.mxu0 0
    %229 = vmatprep.subr.bf16.mxu0 0
    %230 = vmatpush1.bf16.msra.mxu0 0
    %231 = vmatprep.subr.bf16.mxu0 0
    %232 = vmatpush1.bf16.msra.mxu0 0
    %233 = vmatprep.subr.bf16.mxu0 0
    %234 = vmatpush1.bf16.msra.mxu0 0
    %235 = vmatprep.subr.bf16.mxu0 0
    %236 = vmatpush1.bf16.msra.mxu0 0
    %237 = vmatprep.subr.bf16.mxu0 0
    %238 = vmatpush1.bf16.msra.mxu0 0
    %239 = vmatprep.subr.bf16.mxu0 0
    %240 = vmatpush1.bf16.msra.mxu0 0
    %241 = vmatprep.subr.bf16.mxu0 0
    %242 = vmatpush1.bf16.msra.mxu0 0
    %243 = vmatprep.subr.bf16.mxu0 0
    %244 = vmatpush1.bf16.msra.mxu0 0
    %245 = vmatprep.subr.bf16.mxu0 0
    %246 = vmatpush1.bf16.msra.mxu0 0
    %247 = vmatprep.subr.bf16.mxu0 0
    %248 = vmatpush1.bf16.msra.mxu0 0
    %249 = vmatprep.mubr.bf16.mxu0 0
    %250 = vmatmul.mubr.bf16.gmra.mrb[0].mxu0 %v215
    %v251 = vpop.f32.mrb[0].mxu0
    %v252 = vadd.f32 %v56, %v251
    %v253 = vpop.f32.mrb[0].mxu0
    %v254 = vpop.f32.mrb[0].mxu0
    %v255 = vpop.f32.mrb[0].mxu0
    %256 = vdwg.mxu0
    %v257 = vmax.f32 %v252, 0.0
    %v258 = vpack.c.bf16 %v257, %v257
    %259 = vmatprep.subr.bf16.mxu0 0
    %260 = vmatpush1.bf16.msra.mxu0 %v154
    %261 = vmatprep.subr.bf16.mxu0 0
    %262 = vmatpush1.bf16.msra.mxu0 %v155
    %263 = vmatprep.subr.bf16.mxu0 0
    %264 = vmatpush1.bf16.msra.mxu0 %v156
    %265 = vmatprep.subr.bf16.mxu0 0
    %266 = vmatpush1.bf16.msra.mxu0 %v157
    %267 = vmatprep.subr.bf16.mxu0 0
    %268 = vmatpush1.bf16.msra.mxu0 %v158
    %269 = vmatprep.subr.bf16.mxu0 0
    %270 = vmatpush1.bf16.msra.mxu0 %v159
    %271 = vmatprep.subr.bf16.mxu0 0
    %272 = vmatpush1.bf16.msra.mxu0 %v160
    %273 = vmatprep.subr.bf16.mxu0 0
    %274 = vmatpush1.bf16.msra.mxu0 %v161
    %275 = vmatprep.subr.bf16.mxu0 0
    %276 = vmatpush1.bf16.msra.mxu0 0
    %277 = vmatprep.subr.bf16.mxu0 0
    %278 = vmatpush1.bf16.msra.mxu0 0
    %279 = vmatprep.subr.bf16.mxu0 0
    %280 = vmatpush1.bf16.msra.mxu0 0
    %281 = vmatprep.subr.bf16.mxu0 0
    %282 = vmatpush1.bf16.msra.mxu0 0
    %283 = vmatprep.subr.bf16.mxu0 0
    %284 = vmatpush1.bf16.msra.mxu0 0
    %285 = vmatprep.subr.bf16.mxu0 0
    %286 = vmatpush1.bf16.msra.mxu0 0
    %287 = vmatprep.subr.bf16.mxu0 0
    %288 = vmatpush1.bf16.msra.mxu0 0
    %289 = vmatprep.subr.bf16.mxu0 0
    %290 = vmatpush1.bf16.msra.mxu0 0
    %291 = vmatprep.mubr.bf16.mxu0 0
    %292 = vmatmul.mubr.bf16.gmra.mrb[0].mxu0 %v258
    %v293 = vpop.f32.mrb[0].mxu0
    %v294 = vadd.f32 %v120, %v293
    %v295 = vpop.f32.mrb[0].mxu0
    %v296 = vpop.f32.mrb[0].mxu0
    %v297 = vpop.f32.mrb[0].mxu0
    %298 = vdwg.mxu0
    %299 = vst.msk [vmem:[#allocation4] sm:$0xff] %vm210, %v294
    // Predicated region
    $region26: #{tpu_custom_call.1} parent=1 // pred_check
      _
    $region27: #{tpu_custom_call.1} parent=1 // pred_check_branch
      %301 = sbr.rel (0) target = $region29
    $region28: #{tpu_custom_call.1} parent=1 // pred_region
      %s303 = ssub.s32 128, 128
      %304 = vsyncadd [#allocation3], %s303
      %s306 = sshll.u32 [#allocation2], 4
      %s307 = int_to_ptr.vmem [resolvable:$true] %s306
      %309 = dma.vmem_to_hbm [thread:$0]  %s307, 128, %s6, [#allocation3]
    $region29: #{tpu_custom_call.1} parent=1 // pred_fallthru
      _
    // Predicated region
    $region30: #{tpu_custom_call.1} parent=1 // pred_check
      _
    $region31: #{tpu_custom_call.1} parent=1 // pred_check_branch
      %311 = sbr.rel (0) target = $region33
    $region32: #{tpu_custom_call.1} parent=1 // pred_region
      %s313 = ssub.s32 128, 128
      %314 = vsyncadd [#allocation5], %s313
      %s316 = sshll.u32 [#allocation4], 4
      %s317 = int_to_ptr.vmem [resolvable:$true] %s316
      %319 = dma.vmem_to_hbm [thread:$0]  %s317, 128, %s7, [#allocation5]
    $region33: #{tpu_custom_call.1} parent=1 // pred_fallthru
      _
    // Predicated region
    $region34: #{tpu_custom_call.1} parent=1 // pred_check
      _
    $region35: #{tpu_custom_call.1} parent=1 // pred_check_branch
      %321 = sbr.rel (0) target = $region37
    $region36: #{tpu_custom_call.1} parent=1 // pred_region
      %322 = dma.done [#allocation3], 128
    $region37: #{tpu_custom_call.1} parent=1 // pred_fallthru
      _
    // Predicated region
    $region38: #{tpu_custom_call.1} parent=1 // pred_check
      _
    $region39: #{tpu_custom_call.1} parent=1 // pred_check_branch
      %324 = sbr.rel (0) target = $region41
    $region40: #{tpu_custom_call.1} parent=1 // pred_region
      %325 = dma.done [#allocation5], 128
    $region41: #{tpu_custom_call.1} parent=1 // pred_fallthru
      _
    %326 = vsyncpa [#allocation3], 1
    %327 = vsyncpa [#allocation5], 1

// kernel: tpu_custom_call.1
$region0: #{tpu_custom_call.1}
  #allocation0 [shape = 'u32[]', space=smem, size = 0x4, offset = 0x4, fixed_abs, tag = 'smem constant byte address 0x4 - core index']
  #allocation1 [shape = 'u32[144,128]{1,0:T(1,128)}', space=vmem, size = 0x12000, scoped, tag = 'internal scratch']
  %s0 = inlined_call_operand.vmem [shape: f32[8,32], index: 0, kind: input, shape index: {}]
  %s1 = inlined_call_operand.vmem [shape: f32[8,32], index: 1, kind: input, shape index: {}]
  %s2 = inlined_call_operand.vmem [shape: bf16[32,128], index: 2, kind: input, shape index: {}]
  %s3 = inlined_call_operand.vmem [shape: f32[1,128], index: 3, kind: input, shape index: {}]
  %s4 = inlined_call_operand.vmem [shape: bf16[128,16], index: 4, kind: input, shape index: {}]
  %s5 = inlined_call_operand.vmem [shape: f32[1,16], index: 5, kind: input, shape index: {}]
  %s6 = inlined_call_operand.hbm [shape: f32[8,16], index: 6, kind: output, shape index: {0}]
  %s7 = inlined_call_operand.hbm [shape: f32[8,16], index: 7, kind: output, shape index: {1}]
  %8 = xla_tuple %s6, %s7
  %s9 = sld [smem:[#allocation0]]
  $region42: #{tpu_custom_call.1} parent=0
    _
  %s11 = ssub.s32 1, %s9
  %s12 = scalar_select 0, %s11, %s9
  $region1: #{tpu_custom_call.1} parent=0
    #allocation2 [shape = 'u8[4096]{0}', space=vmem, size = 0x1000, scoped, tag = 'output window, operand 0, single buffered']
    #allocation3 [shape = 's32[1]{0}', space=sflag, size = 0x4, scoped, tag = 'scoped memory for tpu_custom_call.1']
    #allocation4 [shape = 'u8[4096]{0}', space=vmem, size = 0x1000, scoped, tag = 'output window, operand 1, single buffered']
    #allocation5 [shape = 's32[1]{0}', space=sflag, size = 0x4, scoped, tag = 'scoped memory for tpu_custom_call.1']
    %13 = vsyncpa [#allocation3], 0
    %14 = vsyncpa [#allocation5], 0
    // Predicated region
    $region2: #{tpu_custom_call.1} parent=1 // pred_check
      _
    $region3: #{tpu_custom_call.1} parent=1 // pred_check_branch
      %16 = sbr.rel (0) target = $region5
    $region4: #{tpu_custom_call.1} parent=1 // pred_region
      _
    $region5: #{tpu_custom_call.1} parent=1 // pred_fallthru
      _
    // Predicated region
    $region6: #{tpu_custom_call.1} parent=1 // pred_check
      _
    $region7: #{tpu_custom_call.1} parent=1 // pred_check_branch
      %18 = sbr.rel (0) target = $region9
    $region8: #{tpu_custom_call.1} parent=1 // pred_region
      _
    $region9: #{tpu_custom_call.1} parent=1 // pred_fallthru
      _
    // Predicated region
    $region10: #{tpu_custom_call.1} parent=1 // pred_check
      _
    $region11: #{tpu_custom_call.1} parent=1 // pred_check_branch
      %20 = sbr.rel (0) target = $region13
    $region12: #{tpu_custom_call.1} parent=1 // pred_region
      _
    $region13: #{tpu_custom_call.1} parent=1 // pred_fallthru
      _
    // Predicated region
    $region14: #{tpu_custom_call.1} parent=1 // pred_check
      _
    $region15: #{tpu_custom_call.1} parent=1 // pred_check_branch
      %22 = sbr.rel (0) target = $region17
    $region16: #{tpu_custom_call.1} parent=1 // pred_region
      _
    $region17: #{tpu_custom_call.1} parent=1 // pred_fallthru
      _
    // Predicated region
    $region18: #{tpu_custom_call.1} parent=1 // pred_check
      _
    $region19: #{tpu_custom_call.1} parent=1 // pred_check_branch
      %24 = sbr.rel (0) target = $region21
    $region20: #{tpu_custom_call.1} parent=1 // pred_region
      _
    $region21: #{tpu_custom_call.1} parent=1 // pred_fallthru
      _
    // Predicated region
    $region22: #{tpu_custom_call.1} parent=1 // pred_check
      _
    $region23: #{tpu_custom_call.1} parent=1 // pred_check_branch
      %26 = sbr.rel (0) target = $region25
    $region24: #{tpu_custom_call.1} parent=1 // pred_region
      _
    $region25: #{tpu_custom_call.1} parent=1 // pred_fallthru
      _
    %v28 = vld [vmem:[%s2] sm:$0xf]
    %v29 = vld [vmem:[%s2 + $0x4] sm:$0xf]
    %v30 = vld [vmem:[%s2 + $0x8] sm:$0xf]
    %v31 = vld [vmem:[%s2 + $0xc] sm:$0xf]
    %v32 = vld [vmem:[%s3] sm:$0x1]
    %v33 = vld [vmem:[%s4] sm:$0xf]
    %v34 = vld [vmem:[%s4 + $0x4] sm:$0xf]
    %v35 = vld [vmem:[%s4 + $0x8] sm:$0xf]
    %v36 = vld [vmem:[%s4 + $0xc] sm:$0xf]
    %v37 = vld [vmem:[%s4 + $0x10] sm:$0xf]
    %v38 = vld [vmem:[%s4 + $0x14] sm:$0xf]
    %v39 = vld [vmem:[%s4 + $0x18] sm:$0xf]
    %v40 = vld [vmem:[%s4 + $0x1c] sm:$0xf]
    %v41 = vld [vmem:[%s4 + $0x20] sm:$0xf]
    %v42 = vld [vmem:[%s4 + $0x24] sm:$0xf]
    %v43 = vld [vmem:[%s4 + $0x28] sm:$0xf]
    %v44 = vld [vmem:[%s4 + $0x2c] sm:$0xf]
    %v45 = vld [vmem:[%s4 + $0x30] sm:$0xf]
    %v46 = vld [vmem:[%s4 + $0x34] sm:$0xf]
    %v47 = vld [vmem:[%s4 + $0x38] sm:$0xf]
    %v48 = vld [vmem:[%s4 + $0x3c] sm:$0xf]
    %v49 = vld [vmem:[%s5] sm:$0x1]
    %v50 = vld [vmem:[%s0] sm:$0xff]
    %v51 = vpack.c.bf16 %v50, %v50
    %v53 = vlaneseq
    %v54 = vshrl.u32 %v53, 7
    %v55 = vsub.s32 0, %v54
    %v56 = vrot.slane %v32, %v55
    %v62 = vunpack.c.l.b16 %v28
    %v63 = vunpack.c.l.b16 %v29
    %v64 = vunpack.c.l.b16 %v30
    %v65 = vunpack.c.l.b16 %v31
    %v66 = vpack.c.b16 %v63, %v62
    %v67 = vpack.c.b16 %v65, %v64
    %vm70 = vcmask 261120
    %v72 = vsel %vm70, %v51, 0
    %74 = vmatprep.subr.bf16.mxu0 0
    %75 = vmatpush1.bf16.msra.mxu0 %v66
    %76 = vmatprep.subr.bf16.mxu0 0
    %77 = vmatpush1.bf16.msra.mxu0 %v67
    %78 = vmatprep.subr.bf16.mxu0 0
    %79 = vmatpush1.bf16.msra.mxu0 0
    %80 = vmatprep.subr.bf16.mxu0 0
    %81 = vmatpush1.bf16.msra.mxu0 0
    %82 = vmatprep.subr.bf16.mxu0 0
    %83 = vmatpush1.bf16.msra.mxu0 0
    %84 = vmatprep.subr.bf16.mxu0 0
    %85 = vmatpush1.bf16.msra.mxu0 0
    %86 = vmatprep.subr.bf16.mxu0 0
    %87 = vmatpush1.bf16.msra.mxu0 0
    %88 = vmatprep.subr.bf16.mxu0 0
    %89 = vmatpush1.bf16.msra.mxu0 0
    %90 = vmatprep.subr.bf16.mxu0 0
    %91 = vmatpush1.bf16.msra.mxu0 0
    %92 = vmatprep.subr.bf16.mxu0 0
    %93 = vmatpush1.bf16.msra.mxu0 0
    %94 = vmatprep.subr.bf16.mxu0 0
    %95 = vmatpush1.bf16.msra.mxu0 0
    %96 = vmatprep.subr.bf16.mxu0 0
    %97 = vmatpush1.bf16.msra.mxu0 0
    %98 = vmatprep.subr.bf16.mxu0 0
    %99 = vmatpush1.bf16.msra.mxu0 0
    %100 = vmatprep.subr.bf16.mxu0 0
    %101 = vmatpush1.bf16.msra.mxu0 0
    %102 = vmatprep.subr.bf16.mxu0 0
    %103 = vmatpush1.bf16.msra.mxu0 0
    %104 = vmatprep.subr.bf16.mxu0 0
    %105 = vmatpush1.bf16.msra.mxu0 0
    %106 = vmatprep.mubr.bf16.mxu0 0
    %107 = vmatmul.mubr.bf16.gmra.mrb[0].mxu0 %v72
    %v108 = vpop.f32.mrb[0].mxu0
    %v109 = vadd.f32 %v56, %v108
    %v110 = vpop.f32.mrb[0].mxu0
    %v111 = vpop.f32.mrb[0].mxu0
    %v112 = vpop.f32.mrb[0].mxu0
    %113 = vdwg.mxu0
    %v114 = vmax.f32 %v109, 0.0
    %v115 = vpack.c.bf16 %v114, %v114
    %v117 = vlaneseq
    %v118 = vshrl.u32 %v117, 7
    %v119 = vsub.s32 0, %v118
    %v120 = vrot.slane %v49, %v119
    %v138 = vunpack.c.l.b16 %v33
    %v139 = vunpack.c.l.b16 %v34
    %v140 = vunpack.c.l.b16 %v35
    %v141 = vunpack.c.l.b16 %v36
    %v142 = vunpack.c.l.b16 %v37
    %v143 = vunpack.c.l.b16 %v38
    %v144 = vunpack.c.l.b16 %v39
    %v145 = vunpack.c.l.b16 %v40
    %v146 = vunpack.c.l.b16 %v41
    %v147 = vunpack.c.l.b16 %v42
    %v148 = vunpack.c.l.b16 %v43
    %v149 = vunpack.c.l.b16 %v44
    %v150 = vunpack.c.l.b16 %v45
    %v151 = vunpack.c.l.b16 %v46
    %v152 = vunpack.c.l.b16 %v47
    %v153 = vunpack.c.l.b16 %v48
    %v154 = vpack.c.b16 %v139, %v138
    %v155 = vpack.c.b16 %v141, %v140
    %v156 = vpack.c.b16 %v143, %v142
    %v157 = vpack.c.b16 %v145, %v144
    %v158 = vpack.c.b16 %v147, %v146
    %v159 = vpack.c.b16 %v149, %v148
    %v160 = vpack.c.b16 %v151, %v150
    %v161 = vpack.c.b16 %v153, %v152
    %170 = vmatprep.subr.bf16.mxu0 0
    %171 = vmatpush1.bf16.msra.mxu0 %v154
    %172 = vmatprep.subr.bf16.mxu0 0
    %173 = vmatpush1.bf16.msra.mxu0 %v155
    %174 = vmatprep.subr.bf16.mxu0 0
    %175 = vmatpush1.bf16.msra.mxu0 %v156
    %176 = vmatprep.subr.bf16.mxu0 0
    %177 = vmatpush1.bf16.msra.mxu0 %v157
    %178 = vmatprep.subr.bf16.mxu0 0
    %179 = vmatpush1.bf16.msra.mxu0 %v158
    %180 = vmatprep.subr.bf16.mxu0 0
    %181 = vmatpush1.bf16.msra.mxu0 %v159
    %182 = vmatprep.subr.bf16.mxu0 0
    %183 = vmatpush1.bf16.msra.mxu0 %v160
    %184 = vmatprep.subr.bf16.mxu0 0
    %185 = vmatpush1.bf16.msra.mxu0 %v161
    %186 = vmatprep.subr.bf16.mxu0 0
    %187 = vmatpush1.bf16.msra.mxu0 0
    %188 = vmatprep.subr.bf16.mxu0 0
    %189 = vmatpush1.bf16.msra.mxu0 0
    %190 = vmatprep.subr.bf16.mxu0 0
    %191 = vmatpush1.bf16.msra.mxu0 0
    %192 = vmatprep.subr.bf16.mxu0 0
    %193 = vmatpush1.bf16.msra.mxu0 0
    %194 = vmatprep.subr.bf16.mxu0 0
    %195 = vmatpush1.bf16.msra.mxu0 0
    %196 = vmatprep.subr.bf16.mxu0 0
    %197 = vmatpush1.bf16.msra.mxu0 0
    %198 = vmatprep.subr.bf16.mxu0 0
    %199 = vmatpush1.bf16.msra.mxu0 0
    %200 = vmatprep.subr.bf16.mxu0 0
    %201 = vmatpush1.bf16.msra.mxu0 0
    %202 = vmatprep.mubr.bf16.mxu0 0
    %203 = vmatmul.mubr.bf16.gmra.mrb[0].mxu0 %v115
    %v204 = vpop.f32.mrb[0].mxu0
    %v205 = vadd.f32 %v120, %v204
    %v206 = vpop.f32.mrb[0].mxu0
    %v207 = vpop.f32.mrb[0].mxu0
    %v208 = vpop.f32.mrb[0].mxu0
    %209 = vdwg.mxu0
    %vm210 = vcmask 130048
    %211 = vst.msk [vmem:[#allocation2] sm:$0xff] %vm210, %v205
    %v212 = vld [vmem:[%s1] sm:$0xff]
    %v213 = vpack.c.bf16 %v212, %v212
    %v215 = vsel %vm70, %v213, 0
    %217 = vmatprep.subr.bf16.mxu0 0
    %218 = vmatpush1.bf16.msra.mxu0 %v66
    %219 = vmatprep.subr.bf16.mxu0 0
    %220 = vmatpush1.bf16.msra.mxu0 %v67
    %221 = vmatprep.subr.bf16.mxu0 0
    %222 = vmatpush1.bf16.msra.mxu0 0
    %223 = vmatprep.subr.bf16.mxu0 0
    %224 = vmatpush1.bf16.msra.mxu0 0
    %225 = vmatprep.subr.bf16.mxu0 0
    %226 = vmatpush1.bf16.msra.mxu0 0
    %227 = vmatprep.subr.bf16.mxu0 0
    %228 = vmatpush1.bf16.msra.mxu0 0
    %229 = vmatprep.subr.bf16.mxu0 0
    %230 = vmatpush1.bf16.msra.mxu0 0
    %231 = vmatprep.subr.bf16.mxu0 0
    %232 = vmatpush1.bf16.msra.mxu0 0
    %233 = vmatprep.subr.bf16.mxu0 0
    %234 = vmatpush1.bf16.msra.mxu0 0
    %235 = vmatprep.subr.bf16.mxu0 0
    %236 = vmatpush1.bf16.msra.mxu0 0
    %237 = vmatprep.subr.bf16.mxu0 0
    %238 = vmatpush1.bf16.msra.mxu0 0
    %239 = vmatprep.subr.bf16.mxu0 0
    %240 = vmatpush1.bf16.msra.mxu0 0
    %241 = vmatprep.subr.bf16.mxu0 0
    %242 = vmatpush1.bf16.msra.mxu0 0
    %243 = vmatprep.subr.bf16.mxu0 0
    %244 = vmatpush1.bf16.msra.mxu0 0
    %245 = vmatprep.subr.bf16.mxu0 0
    %246 = vmatpush1.bf16.msra.mxu0 0
    %247 = vmatprep.subr.bf16.mxu0 0
    %248 = vmatpush1.bf16.msra.mxu0 0
    %249 = vmatprep.mubr.bf16.mxu0 0
    %250 = vmatmul.mubr.bf16.gmra.mrb[0].mxu0 %v215
    %v251 = vpop.f32.mrb[0].mxu0
    %v252 = vadd.f32 %v56, %v251
    %v253 = vpop.f32.mrb[0].mxu0
    %v254 = vpop.f32.mrb[0].mxu0
    %v255 = vpop.f32.mrb[0].mxu0
    %256 = vdwg.mxu0
    %v257 = vmax.f32 %v252, 0.0
    %v258 = vpack.c.bf16 %v257, %v257
    %259 = vmatprep.subr.bf16.mxu0 0
    %260 = vmatpush1.bf16.msra.mxu0 %v154
    %261 = vmatprep.subr.bf16.mxu0 0
    %262 = vmatpush1.bf16.msra.mxu0 %v155
    %263 = vmatprep.subr.bf16.mxu0 0
    %264 = vmatpush1.bf16.msra.mxu0 %v156
    %265 = vmatprep.subr.bf16.mxu0 0
    %266 = vmatpush1.bf16.msra.mxu0 %v157
    %267 = vmatprep.subr.bf16.mxu0 0
    %268 = vmatpush1.bf16.msra.mxu0 %v158
    %269 = vmatprep.subr.bf16.mxu0 0
    %270 = vmatpush1.bf16.msra.mxu0 %v159
    %271 = vmatprep.subr.bf16.mxu0 0
    %272 = vmatpush1.bf16.msra.mxu0 %v160
    %273 = vmatprep.subr.bf16.mxu0 0
    %274 = vmatpush1.bf16.msra.mxu0 %v161
    %275 = vmatprep.subr.bf16.mxu0 0
    %276 = vmatpush1.bf16.msra.mxu0 0
    %277 = vmatprep.subr.bf16.mxu0 0
    %278 = vmatpush1.bf16.msra.mxu0 0
    %279 = vmatprep.subr.bf16.mxu0 0
    %280 = vmatpush1.bf16.msra.mxu0 0
    %281 = vmatprep.subr.bf16.mxu0 0
    %282 = vmatpush1.bf16.msra.mxu0 0
    %283 = vmatprep.subr.bf16.mxu0 0
    %284 = vmatpush1.bf16.msra.mxu0 0
    %285 = vmatprep.subr.bf16.mxu0 0
    %286 = vmatpush1.bf16.msra.mxu0 0
    %287 = vmatprep.subr.bf16.mxu0 0
    %288 = vmatpush1.bf16.msra.mxu0 0
    %289 = vmatprep.subr.bf16.mxu0 0
    %290 = vmatpush1.bf16.msra.mxu0 0
    %291 = vmatprep.mubr.bf16.mxu0 0
    %292 = vmatmul.mubr.bf16.gmra.mrb[0].mxu0 %v258
    %v293 = vpop.f32.mrb[0].mxu0
    %v294 = vadd.f32 %v120, %v293
    %v295 = vpop.f32.mrb[0].mxu0
    %v296 = vpop.f32.mrb[0].mxu0
    %v297 = vpop.f32.mrb[0].mxu0
    %298 = vdwg.mxu0
    %299 = vst.msk [vmem:[#allocation4] sm:$0xff] %vm210, %v294
    // Predicated region
    $region26: #{tpu_custom_call.1} parent=1 // pred_check
      _
    $region27: #{tpu_custom_call.1} parent=1 // pred_check_branch
      %301 = sbr.rel (0) target = $region29
    $region28: #{tpu_custom_call.1} parent=1 // pred_region
      %s303 = ssub.s32 128, 128
      %304 = vsyncadd [#allocation3], %s303
      %s306 = sshll.u32 [#allocation2], 4
      %s307 = int_to_ptr.vmem [resolvable:$true] %s306
      %309 = dma.vmem_to_hbm [thread:$0]  %s307, 128, %s6, [#allocation3]
    $region29: #{tpu_custom_call.1} parent=1 // pred_fallthru
      _
    // Predicated region
    $region30: #{tpu_custom_call.1} parent=1 // pred_check
      _
    $region31: #{tpu_custom_call.1} parent=1 // pred_check_branch
      %311 = sbr.rel (0) target = $region33
    $region32: #{tpu_custom_call.1} parent=1 // pred_region
      %s313 = ssub.s32 128, 128
      %314 = vsyncadd [#allocation5], %s313
      %s316 = sshll.u32 [#allocation4], 4
      %s317 = int_to_ptr.vmem [resolvable:$true] %s316
      %319 = dma.vmem_to_hbm [thread:$0]  %s317, 128, %s7, [#allocation5]
    $region33: #{tpu_custom_call.1} parent=1 // pred_fallthru
      _
    // Predicated region
    $region34: #{tpu_custom_call.1} parent=1 // pred_check
      _
    $region35: #{tpu_custom_call.1} parent=1 // pred_check_branch
      %321 = sbr.rel (0) target = $region37
    $region36: #{tpu_custom_call.1} parent=1 // pred_region
      %322 = dma.done [#allocation3], 128
    $region37: #{tpu_custom_call.1} parent=1 // pred_fallthru
      _
    // Predicated region
    $region38: #{tpu_custom_call.1} parent=1 // pred_check
      _
    $region39: #{tpu_custom_call.1} parent=1 // pred_check_branch
      %324 = sbr.rel (0) target = $region41
    $region40: #{tpu_custom_call.1} parent=1 // pred_region
      %325 = dma.done [#allocation5], 128
    $region41: #{tpu_custom_call.1} parent=1 // pred_fallthru
      _
    %326 = vsyncpa [#allocation3], 1
    %327 = vsyncpa [#allocation5], 1

</llo_original>
